<compile_context>
chip_gen: v7x
topology: tpu7x:2x2x1
jax: 0.10.0
libtpu: 0.0.40
codegen_flags: <defaults>
</compile_context>

<pallas_src>
import jax
import jax.numpy as jnp
from jax.experimental import pallas as pl
from jax.experimental.pallas import tpu as pltpu

H1 = 400       # true layer1 width (PyTorch module)
H2 = 300       # true layer2 width
H1_PAD = 512   # padded to multiple of 128 (lane-dense, unmasked vregs)
H2_PAD = 384


def _round_up(n, m):
    return ((n + m - 1) // m) * m


def _choose_tile_b(batch):
    """Pick a lane/MXU-friendly batch tile.

    Priorities: (1) minimize padded-row waste (garbage compute + DMA),
    (2) prefer >=2 grid steps so v7x's two TensorCores both get work,
    (3) among ties prefer the largest tile (fewer per-step overheads).
    """
    b8 = _round_up(batch, 8)
    if b8 <= 128:
        return b8  # tiny batch: one small tile, splitting is pointless
    best_tile, best_key = None, None
    for t in (1024, 768, 512, 384, 256, 128):
        bp = _round_up(b8, t)
        waste = bp - batch
        n_tiles = bp // t
        key = (waste, 0 if n_tiles >= 2 else 1, -t)
        if best_key is None or key < best_key:
            best_key, best_tile = key, t
    return best_tile


def critic_kernel(xu_ref, w1_ref, b1_ref, w2_ref, b2_ref, w3_ref, b3_ref,
                  out_ref):
    cdt = w1_ref.dtype  # MXU input dtype: bfloat16 (default) or float32
    xu = xu_ref[...].astype(cdt)

    # Layer 1: single fused K = state_dim+action_dim MXU pass, f32 accumulation.
    h1 = jnp.dot(xu, w1_ref[...], preferred_element_type=jnp.float32)
    h1 = jnp.maximum(h1 + b1_ref[...], 0.0)            # bias + ReLU in f32 (VPU)

    # Layer 2: the dominant 512x384 matmul.
    h2 = jnp.dot(h1.astype(cdt), w2_ref[...], preferred_element_type=jnp.float32)
    h2 = jnp.maximum(h2 + b2_ref[...], 0.0)

    # Layer 3 (single output column): VPU multiply + lane reduction (XLU),
    # avoiding a 1/256-utilized MXU pass; w3 stays f32 (no MXU involved),
    # b3 is read as an SMEM scalar (no (1,1) VMEM tile / DMA).
    q = jnp.sum(h2 * w3_ref[...], axis=-1, keepdims=True) + b3_ref[0]
    out_ref[...] = q
    # Output kept as a (TILE_B, 1) column: emitting a lane-dense (1, TILE_B)
    # row would require an in-kernel sublane->lane relayout whose cost is on
    # par with the few masked stores it removes at these output sizes.


def critic_forward(x, u, params, *, tile_b=None, use_bf16=True):
    """params = padded kernel params from `pad_critic_params`."""
    w1, b1, w2, b2, w3_row, b3 = params
    B, sdim = x.shape
    adim = u.shape[1]
    kdim = sdim + adim

    wdt = jnp.bfloat16 if use_bf16 else jnp.float32
    w1 = w1.astype(wdt)
    w2 = w2.astype(wdt)
    b1 = b1.astype(jnp.float32)
    b2 = b2.astype(jnp.float32)
    w3_row = w3_row.astype(jnp.float32)   # layer 3 is VPU-only: keep f32 always
    b3 = b3.astype(jnp.float32)

    # Batch tiling: multiples of 8, auto policy minimizes padding waste and
    # gives v7x >=2 parallel tiles when the batch permits.
    if tile_b is None:
        tile_b = _choose_tile_b(B)
    else:
        tile_b = max(8, min(_round_up(int(tile_b), 8), 1024, _round_up(B, 8)))
    Bp = _round_up(B, tile_b)
    n_tiles = Bp // tile_b

    # Fused layer-1 input: one lane-contiguous (Bp, sdim+adim) block.
    xu = jnp.concatenate([x.astype(jnp.float32), u.astype(jnp.float32)], axis=1)
    if Bp != B:
        xu = jnp.pad(xu, ((0, Bp - B), (0, 0)))

    # Advisory cost hint so XLA can overlap this call with surrounding ops.
    wbytes = jnp.dtype(wdt).itemsize
    cost = pl.CostEstimate(
        flops=2 * Bp * (kdim * H1_PAD + H1_PAD * H2_PAD + H2_PAD),
        transcendentals=0,
        bytes_accessed=(kdim * H1_PAD + H1_PAD * H2_PAD) * wbytes
        + (H1_PAD + 2 * H2_PAD + 1) * 4
        + Bp * (kdim + 1) * 4,
    )

    tiled = lambda feat: pl.BlockSpec((tile_b, feat), lambda i: (i, 0))
    resident = lambda shape: pl.BlockSpec(shape, lambda i: (0, 0))

    out = pl.pallas_call(
        critic_kernel,
        out_shape=jax.ShapeDtypeStruct((Bp, 1), jnp.float32),
        grid=(n_tiles,),
        in_specs=[
            tiled(kdim),                                        # xu  (TILE_B, S+A)
            resident((kdim, H1_PAD)),                           # w1  (resident)
            resident((1, H1_PAD)),                              # b1
            resident((H1_PAD, H2_PAD)),                         # w2
            resident((1, H2_PAD)),                              # b2
            resident((1, H2_PAD)),                              # w3 row (f32)
            pl.BlockSpec(memory_space=pltpu.MemorySpace.SMEM),  # b3 scalar
        ],
        out_specs=tiled(1),
        compiler_params=pltpu.CompilerParams(
            dimension_semantics=("parallel",)),
        cost_estimate=cost,
        # VMEM working set (<6 MB even at tile_b=1024, f32) is well under the
        # scoped limit on v5e/v6e/v7x; no vmem_limit_bytes override needed.
    )(xu, w1, b1, w2, b2, w3_row, b3)
    return out[:B]


def init_critic_params(key, state_dim, action_dim):
    """PyTorch-style nn.Linear init: U(-1/sqrt(fan_in), 1/sqrt(fan_in)).
    Weights stored as (in_features, out_features) so forward is act @ W + b."""
    def linear(k, fan_in, fan_out):
        kw, kb = jax.random.split(k)
        bound = 1.0 / jnp.sqrt(jnp.float32(fan_in))
        w = jax.random.uniform(kw, (fan_in, fan_out), jnp.float32, -bound, bound)
        b = jax.random.uniform(kb, (fan_out,), jnp.float32, -bound, bound)
        return w, b

    k1, k2, k3 = jax.random.split(key, 3)
    w1, b1 = linear(k1, state_dim + action_dim, H1)
    w2, b2 = linear(k2, H1, H2)
    w3, b3 = linear(k3, H2, 1)
    return (w1, b1, w2, b2, w3, b3)


def pad_critic_params(params, state_dim, action_dim):
    """Zero-pad hidden dims to multiples of 128. Padding is exact: padded
    h1/h2 columns are relu(0+0)=0 and hit zero rows/cols of the next weight,
    so the Q-value is unchanged (in both f32 and bf16)."""
    del state_dim, action_dim  # layer-1 weight is kept fused (concat order)
    w1, b1, w2, b2, w3, b3 = params
    w1p = jnp.pad(w1, ((0, 0), (0, H1_PAD - H1)))
    b1p = jnp.pad(b1, (0, H1_PAD - H1)).reshape(1, H1_PAD)
    w2p = jnp.pad(w2, ((0, H1_PAD - H1), (0, H2_PAD - H2)))
    b2p = jnp.pad(b2, (0, H2_PAD - H2)).reshape(1, H2_PAD)
    w3r = jnp.pad(w3[:, 0], (0, H2_PAD - H2)).reshape(1, H2_PAD)
    b3v = b3.reshape(1,)
    return (w1p, b1p, w2p, b2p, w3r, b3v)


def critic_reference(x, u, params):
    w1, b1, w2, b2, w3, b3 = params
    xu = jnp.concatenate([x, u], axis=1)
    h1 = jnp.maximum(xu @ w1 + b1, 0.0)
    h2 = jnp.maximum(h1 @ w2 + b2, 0.0)
    return h2 @ w3 + b3


if __name__ == "__main__":
    key = jax.random.PRNGKey(0)
    k_x, k_u, k_p, k_x2, k_u2, k_x3, k_u3 = jax.random.split(key, 7)

    state_dim, action_dim = 16, 8
    raw_params = init_critic_params(k_p, state_dim, action_dim)
    params = pad_critic_params(raw_params, state_dim, action_dim)

    # 1) Tiny batch, exact f32 MXU path (single tile).
    x = jax.random.normal(k_x, (2, state_dim), jnp.float32)
    u = jax.random.normal(k_u, (2, action_dim), jnp.float32)
    q = jax.block_until_ready(critic_forward(x, u, params, use_bf16=False))
    q_ref = critic_reference(x, u, raw_params)
    assert q.shape == (2, 1)
    assert jnp.allclose(q, q_ref, atol=5e-3, rtol=5e-3), (q, q_ref)

    # 2) Multi-tile grid (explicit small tile) + default bf16 MXU path.
    x2 = jax.random.normal(k_x2, (64, state_dim), jnp.float32)
    u2 = jax.random.normal(k_u2, (64, action_dim), jnp.float32)
    q2 = jax.block_until_ready(critic_forward(x2, u2, params, tile_b=16))
    q2_ref = critic_reference(x2, u2, raw_params)
    assert q2.shape == (64, 1)
    assert jnp.allclose(q2, q2_ref, atol=5e-2, rtol=5e-2), (q2, q2_ref)

    # 3) Auto tile policy: B=200 -> tile_b=128, Bp=256, 2 parallel grid steps.
    x3 = jax.random.normal(k_x3, (200, state_dim), jnp.float32)
    u3 = jax.random.normal(k_u3, (200, action_dim), jnp.float32)
    q3 = jax.block_until_ready(critic_forward(x3, u3, params))
    q3_ref = critic_reference(x3, u3, raw_params)
    assert q3.shape == (200, 1)
    assert jnp.allclose(q3, q3_ref, atol=5e-2, rtol=5e-2), (q3, q3_ref)

    print("KERNEL_OK")
</pallas_src>

<mosaic_0001>
module attributes {stable_mosaic.version = 11 : i64} {
  func.func @critic_kernel(%arg0: i32, %arg1: memref<8x24xf32, #tpu.memory_space<vmem>>, %arg2: memref<24x512xf32, #tpu.memory_space<vmem>>, %arg3: memref<1x512xf32, #tpu.memory_space<vmem>>, %arg4: memref<512x384xf32, #tpu.memory_space<vmem>>, %arg5: memref<1x384xf32, #tpu.memory_space<vmem>>, %arg6: memref<1x384xf32, #tpu.memory_space<vmem>>, %arg7: memref<1xf32, #tpu.memory_space<smem>>, %arg8: memref<8x1xf32, #tpu.memory_space<vmem>>) attributes {dimension_semantics = [#tpu.dimension_semantics<parallel>], iteration_bounds = array<i64: 1>, scalar_prefetch = 0 : i64, scratch_operands = 0 : i64, tpu.core_type = #tpu.core_type<tc>, window_params = [{transform_indices = @transform_0, window_bounds = array<i64: 8, 24>}, {pipeline_mode = #tpu.pipeline_mode<synchronous>, transform_indices = @transform_1, window_bounds = array<i64: 24, 512>}, {pipeline_mode = #tpu.pipeline_mode<synchronous>, transform_indices = @transform_2, window_bounds = array<i64: 1, 512>}, {pipeline_mode = #tpu.pipeline_mode<synchronous>, transform_indices = @transform_3, window_bounds = array<i64: 512, 384>}, {pipeline_mode = #tpu.pipeline_mode<synchronous>, transform_indices = @transform_4, window_bounds = array<i64: 1, 384>}, {pipeline_mode = #tpu.pipeline_mode<synchronous>, transform_indices = @transform_5, window_bounds = array<i64: 1, 384>}, {transform_indices = @transform_6, window_bounds = array<i64: 1>}, {transform_indices = @transform_7, window_bounds = array<i64: 8, 1>}]} {
    %c0 = arith.constant 0 : index
    %c0_0 = arith.constant 0 : index
    %0 = vector.load %arg1[%c0, %c0_0] : memref<8x24xf32, #tpu.memory_space<vmem>>, vector<8x24xf32>
    %c0_1 = arith.constant 0 : index
    %c0_2 = arith.constant 0 : index
    %1 = vector.load %arg2[%c0_1, %c0_2] : memref<24x512xf32, #tpu.memory_space<vmem>>, vector<24x512xf32>
    %cst = arith.constant dense<0.000000e+00> : vector<8x512xf32>
    %2 = tpu.matmul %0, %1, %cst {dimension_numbers = #tpu.dot_dimension_numbers<[1], [0], [0], [1], [0, 0, 1, 1], [], []>} : vector<8x24xf32>, vector<24x512xf32>, vector<8x512xf32> -> vector<8x512xf32>
    %c0_3 = arith.constant 0 : index
    %c0_4 = arith.constant 0 : index
    %3 = vector.load %arg3[%c0_3, %c0_4] : memref<1x512xf32, #tpu.memory_space<vmem>>, vector<1x512xf32>
    %4 = vector.broadcast %3 : vector<1x512xf32> to vector<8x512xf32>
    %5 = arith.addf %2, %4 : vector<8x512xf32>
    %cst_5 = arith.constant 0.000000e+00 : f32
    %6 = vector.broadcast %cst_5 : f32 to vector<8x512xf32>
    %7 = arith.maximumf %5, %6 : vector<8x512xf32>
    %c0_6 = arith.constant 0 : index
    %c0_7 = arith.constant 0 : index
    %8 = vector.load %arg4[%c0_6, %c0_7] : memref<512x384xf32, #tpu.memory_space<vmem>>, vector<512x384xf32>
    %cst_8 = arith.constant dense<0.000000e+00> : vector<8x384xf32>
    %9 = tpu.matmul %7, %8, %cst_8 {dimension_numbers = #tpu.dot_dimension_numbers<[1], [0], [0], [1], [0, 0, 1, 1], [], []>} : vector<8x512xf32>, vector<512x384xf32>, vector<8x384xf32> -> vector<8x384xf32>
    %c0_9 = arith.constant 0 : index
    %c0_10 = arith.constant 0 : index
    %10 = vector.load %arg5[%c0_9, %c0_10] : memref<1x384xf32, #tpu.memory_space<vmem>>, vector<1x384xf32>
    %11 = vector.broadcast %10 : vector<1x384xf32> to vector<8x384xf32>
    %12 = arith.addf %9, %11 : vector<8x384xf32>
    %cst_11 = arith.constant 0.000000e+00 : f32
    %13 = vector.broadcast %cst_11 : f32 to vector<8x384xf32>
    %14 = arith.maximumf %12, %13 : vector<8x384xf32>
    %c0_12 = arith.constant 0 : index
    %c0_13 = arith.constant 0 : index
    %15 = vector.load %arg6[%c0_12, %c0_13] : memref<1x384xf32, #tpu.memory_space<vmem>>, vector<1x384xf32>
    %16 = vector.broadcast %15 : vector<1x384xf32> to vector<8x384xf32>
    %17 = arith.mulf %14, %16 : vector<8x384xf32>
    %cst_14 = arith.constant dense<0.000000e+00> : vector<8xf32>
    %18 = vector.multi_reduction <add>, %17, %cst_14 [1] : vector<8x384xf32> to vector<8xf32>
    %19 = vector.shape_cast %18 : vector<8xf32> to vector<8x1xf32>
    %c0_15 = arith.constant 0 : index
    %20 = memref.load %arg7[%c0_15] : memref<1xf32, #tpu.memory_space<smem>>
    %21 = vector.broadcast %20 : f32 to vector<8x1xf32>
    %22 = arith.addf %19, %21 : vector<8x1xf32>
    %c0_16 = arith.constant 0 : index
    %c0_17 = arith.constant 0 : index
    %23 = vector.load %arg8[%c0_16, %c0_17] : memref<8x1xf32, #tpu.memory_space<vmem>>, vector<8x1xf32>
    tpu.vector_store %arg8[%c0_16, %c0_17], %22 {strides = array<i32>} : memref<8x1xf32, #tpu.memory_space<vmem>>, vector<8x1xf32>,
    return
  }
  func.func @transform_0(%arg0: i32) -> (i32, i32) {
    %c0_i32 = arith.constant 0 : i32
    %c0_i32_0 = arith.constant 0 : i32
    return %arg0, %c0_i32 : i32, i32
  }
  func.func @transform_1(%arg0: i32) -> (i32, i32) {
    %c0_i32 = arith.constant 0 : i32
    %c0_i32_0 = arith.constant 0 : i32
    %c0_i32_1 = arith.constant 0 : i32
    return %c0_i32, %c0_i32_0 : i32, i32
  }
  func.func @transform_2(%arg0: i32) -> (i32, i32) {
    %c0_i32 = arith.constant 0 : i32
    %c0_i32_0 = arith.constant 0 : i32
    %c0_i32_1 = arith.constant 0 : i32
    return %c0_i32, %c0_i32_0 : i32, i32
  }
  func.func @transform_3(%arg0: i32) -> (i32, i32) {
    %c0_i32 = arith.constant 0 : i32
    %c0_i32_0 = arith.constant 0 : i32
    %c0_i32_1 = arith.constant 0 : i32
    return %c0_i32, %c0_i32_0 : i32, i32
  }
  func.func @transform_4(%arg0: i32) -> (i32, i32) {
    %c0_i32 = arith.constant 0 : i32
    %c0_i32_0 = arith.constant 0 : i32
    %c0_i32_1 = arith.constant 0 : i32
    return %c0_i32, %c0_i32_0 : i32, i32
  }
  func.func @transform_5(%arg0: i32) -> (i32, i32) {
    %c0_i32 = arith.constant 0 : i32
    %c0_i32_0 = arith.constant 0 : i32
    %c0_i32_1 = arith.constant 0 : i32
    return %c0_i32, %c0_i32_0 : i32, i32
  }
  func.func @transform_6(%arg0: i32) -> i32 {
    %c0_i32 = arith.constant 0 : i32
    %c0_i32_0 = arith.constant 0 : i32
    return %c0_i32 : i32
  }
  func.func @transform_7(%arg0: i32) -> (i32, i32) {
    %c0_i32 = arith.constant 0 : i32
    %c0_i32_0 = arith.constant 0 : i32
    return %arg0, %c0_i32 : i32, i32
  }
}

</mosaic_0001>

<llo_original>
// kernel: tpu_custom_call.1
$region0: #{tpu_custom_call.1}
  #allocation0 [shape = 'u32[]', space=smem, size = 0x4, offset = 0x4, fixed_abs, tag = 'smem constant byte address 0x4 - core index']
  #allocation1 [shape = 'u32[144,128]{1,0:T(1,128)}', space=vmem, size = 0x12000, scoped, tag = 'internal scratch']
  #allocation2 [shape = 'f32[1]{0:T(128)S(6)}', space=smem, size = 0x200, scoped, tag = 'scoped memory for tpu_custom_call.1']
  %s0 = inlined_call_operand.hbm [shape: f32[8,24], index: 0, kind: input, shape index: {}]
  %s1 = inlined_call_operand.hbm [shape: f32[24,512], index: 1, kind: input, shape index: {}]
  %s2 = inlined_call_operand.vmem [shape: f32[1,512], index: 2, kind: input, shape index: {}]
  %s3 = inlined_call_operand.hbm [shape: f32[512,384], index: 3, kind: input, shape index: {}]
  %s4 = inlined_call_operand.vmem [shape: f32[1,384], index: 4, kind: input, shape index: {}]
  %s5 = inlined_call_operand.vmem [shape: f32[1,384], index: 5, kind: input, shape index: {}]
  %s6 = inlined_call_operand.<no memory space> [shape: f32[1], index: 6, kind: input, shape index: {}]
  %s7 = inlined_call_operand.vmem [shape: f32[8,1], index: 7, kind: output, shape index: {}]
  %s8 = sld [smem:[#allocation0]]
  $region50: #{tpu_custom_call.1} parent=0
    _
  %s10 = ssub.s32 1, %s8
  %s11 = scalar_select 0, %s10, %s8
  %12 = sst [smem:[#allocation2]] %s6
  $region1: #{tpu_custom_call.1} parent=0
    #allocation3 [shape = 'u8[4096]{0}', space=vmem, size = 0x1000, scoped, tag = 'input window, operand 0, single buffered']
    #allocation4 [shape = 's32[1]{0}', space=sflag, size = 0x4, scoped, tag = 'scoped memory for tpu_custom_call.1']
    #allocation5 [shape = 'u8[49152]{0}', space=vmem, size = 0xc000, scoped, tag = 'input window, operand 1, single buffered']
    #allocation6 [shape = 's32[1]{0}', space=sflag, size = 0x4, scoped, tag = 'scoped memory for tpu_custom_call.1']
    #allocation7 [shape = 'u8[786432]{0}', space=vmem, size = 0xc0000, scoped, tag = 'input window, operand 3, single buffered']
    %13 = vsyncpa [#allocation4], 0
    %14 = vsyncpa [#allocation6], 0
    // Predicated region
    $region2: #{tpu_custom_call.1} parent=1 // pred_check
      _
    $region3: #{tpu_custom_call.1} parent=1 // pred_check_branch
      %16 = sbr.rel (0) target = $region5
    $region4: #{tpu_custom_call.1} parent=1 // pred_region
      %s18 = ssub.s32 128, 128
      %19 = vsyncadd [#allocation4], %s18
      %s21 = sshll.u32 [#allocation3], 4
      %s22 = int_to_ptr.vmem [resolvable:$true] %s21
      %24 = dma.hbm_to_vmem [thread:$0]  %s0, 128, %s22, [#allocation4]
    $region5: #{tpu_custom_call.1} parent=1 // pred_fallthru
      _
    // Predicated region
    $region6: #{tpu_custom_call.1} parent=1 // pred_check
      _
    $region7: #{tpu_custom_call.1} parent=1 // pred_check_branch
      %26 = sbr.rel (0) target = $region9
    $region8: #{tpu_custom_call.1} parent=1 // pred_region
      %s28 = ssub.s32 1536, 1536
      %29 = vsyncadd [#allocation6], %s28
      %s30 = sshll.u32 [#allocation5], 4
      %s31 = int_to_ptr.vmem [resolvable:$true] %s30
      %36 = dma.hbm_to_vmem [thread:$0]  %s1, 1536, %s31, [#allocation6], 512, 512, 32
    $region9: #{tpu_custom_call.1} parent=1 // pred_fallthru
      _
    // Predicated region
    $region10: #{tpu_custom_call.1} parent=1 // pred_check
      _
    $region11: #{tpu_custom_call.1} parent=1 // pred_check_branch
      %38 = sbr.rel (0) target = $region13
    $region12: #{tpu_custom_call.1} parent=1 // pred_region
      _
    $region13: #{tpu_custom_call.1} parent=1 // pred_fallthru
      _
    // Predicated region
    $region14: #{tpu_custom_call.1} parent=1 // pred_check
      _
    $region15: #{tpu_custom_call.1} parent=1 // pred_check_branch
      %40 = sbr.rel (0) target = $region17
    $region16: #{tpu_custom_call.1} parent=1 // pred_region
      %s42 = ssub.s32 24576, 24576
      %43 = vsyncadd [#allocation6], %s42
      %s44 = sshll.u32 [#allocation7], 4
      %s45 = int_to_ptr.vmem [resolvable:$true] %s44
      %50 = dma.hbm_to_vmem [thread:$0]  %s3, 24576, %s45, [#allocation6], 384, 384, 24
    $region17: #{tpu_custom_call.1} parent=1 // pred_fallthru
      _
    // Predicated region
    $region18: #{tpu_custom_call.1} parent=1 // pred_check
      _
    $region19: #{tpu_custom_call.1} parent=1 // pred_check_branch
      %52 = sbr.rel (0) target = $region21
    $region20: #{tpu_custom_call.1} parent=1 // pred_region
      _
    $region21: #{tpu_custom_call.1} parent=1 // pred_fallthru
      _
    // Predicated region
    $region22: #{tpu_custom_call.1} parent=1 // pred_check
      _
    $region23: #{tpu_custom_call.1} parent=1 // pred_check_branch
      %54 = sbr.rel (0) target = $region25
    $region24: #{tpu_custom_call.1} parent=1 // pred_region
      _
    $region25: #{tpu_custom_call.1} parent=1 // pred_fallthru
      _
    // Predicated region
    $region26: #{tpu_custom_call.1} parent=1 // pred_check
      _
    $region27: #{tpu_custom_call.1} parent=1 // pred_check_branch
      %56 = sbr.rel (0) target = $region29
    $region28: #{tpu_custom_call.1} parent=1 // pred_region
      _
    $region29: #{tpu_custom_call.1} parent=1 // pred_fallthru
      _
    // Predicated region
    $region30: #{tpu_custom_call.1} parent=1 // pred_check
      _
    $region31: #{tpu_custom_call.1} parent=1 // pred_check_branch
      %58 = sbr.rel (0) target = $region33
    $region32: #{tpu_custom_call.1} parent=1 // pred_region
      %59 = dma.done [#allocation4], 128
    $region33: #{tpu_custom_call.1} parent=1 // pred_fallthru
      _
    // Predicated region
    $region34: #{tpu_custom_call.1} parent=1 // pred_check
      _
    $region35: #{tpu_custom_call.1} parent=1 // pred_check_branch
      %61 = sbr.rel (0) target = $region37
    $region36: #{tpu_custom_call.1} parent=1 // pred_region
      %62 = dma.done [#allocation6], 1536
    $region37: #{tpu_custom_call.1} parent=1 // pred_fallthru
      _
    // Predicated region
    $region38: #{tpu_custom_call.1} parent=1 // pred_check
      _
    $region39: #{tpu_custom_call.1} parent=1 // pred_check_branch
      %64 = sbr.rel (0) target = $region41
    $region40: #{tpu_custom_call.1} parent=1 // pred_region
      %65 = dma.done [#allocation6], 24576
    $region41: #{tpu_custom_call.1} parent=1 // pred_fallthru
      _
    %v66 = vld [vmem:[#allocation3] sm:$0xff]
    %v67 = vld [vmem:[#allocation5] sm:$0xff]
    %v68 = vld [vmem:[#allocation5 + $0x8] sm:$0xff]
    %v69 = vld [vmem:[#allocation5 + $0x10] sm:$0xff]
    %v70 = vld [vmem:[#allocation5 + $0x18] sm:$0xff]
    %v71 = vld [vmem:[#allocation5 + $0x20] sm:$0xff]
    %v72 = vld [vmem:[#allocation5 + $0x28] sm:$0xff]
    %v73 = vld [vmem:[#allocation5 + $0x30] sm:$0xff]
    %v74 = vld [vmem:[#allocation5 + $0x38] sm:$0xff]
    %v75 = vld [vmem:[#allocation5 + $0x40] sm:$0xff]
    %v76 = vld [vmem:[#allocation5 + $0x48] sm:$0xff]
    %v77 = vld [vmem:[#allocation5 + $0x50] sm:$0xff]
    %v78 = vld [vmem:[#allocation5 + $0x58] sm:$0xff]
    %v79 = vld [vmem:[%s2] sm:$0xf]
    %v81 = vlaneseq
    %v82 = vshrl.u32 %v81, 7
    %v83 = vsub.s32 0, %v82
    %v84 = vrot.slane %v79, %v83
    %v85 = vlaneseq
    %v86 = vshrl.u32 %v85, 7
    %v87 = vsub.s32 1, %v86
    %v88 = vrot.slane %v79, %v87
    %v89 = vlaneseq
    %v90 = vshrl.u32 %v89, 7
    %v91 = vsub.s32 2, %v90
    %v92 = vrot.slane %v79, %v91
    %v93 = vlaneseq
    %v94 = vshrl.u32 %v93, 7
    %v95 = vsub.s32 3, %v94
    %v96 = vrot.slane %v79, %v95
    %vm101 = vcmask 195584
    %v103 = vsel %vm101, %v66, 0
    %105 = vmatprep.subr.mxu0 %v68
    %106 = vmatpush1.msra.mxu0 %v67
    %107 = vmatprep.subr.mxu0 %v72
    %108 = vmatpush1.msra.mxu0 %v71
    %109 = vmatprep.subr.mxu0 %v76
    %110 = vmatpush1.msra.mxu0 %v75
    %111 = vmatprep.subr.mxu0 0.0
    %112 = vmatpush1.msra.mxu0 0.0
    %113 = vmatprep.subr.mxu0 0.0
    %114 = vmatpush1.msra.mxu0 0.0
    %115 = vmatprep.subr.mxu0 0.0
    %116 = vmatpush1.msra.mxu0 0.0
    %117 = vmatprep.subr.mxu0 0.0
    %118 = vmatpush1.msra.mxu0 0.0
    %119 = vmatprep.subr.mxu0 0.0
    %120 = vmatpush1.msra.mxu0 0.0
    %121 = vmatprep.subr.mxu0 0.0
    %122 = vmatpush1.msra.mxu0 0.0
    %123 = vmatprep.subr.mxu0 0.0
    %124 = vmatpush1.msra.mxu0 0.0
    %125 = vmatprep.subr.mxu0 0.0
    %126 = vmatpush1.msra.mxu0 0.0
    %127 = vmatprep.subr.mxu0 0.0
    %128 = vmatpush1.msra.mxu0 0.0
    %129 = vmatprep.subr.mxu0 0.0
    %130 = vmatpush1.msra.mxu0 0.0
    %131 = vmatprep.subr.mxu0 0.0
    %132 = vmatpush1.msra.mxu0 0.0
    %133 = vmatprep.subr.mxu0 0.0
    %134 = vmatpush1.msra.mxu0 0.0
    %135 = vmatprep.subr.mxu0 0.0
    %136 = vmatpush1.msra.mxu0 0.0
    %137 = vmatprep.subr.mxu0 0.0
    %138 = vmatpush1.msra.mxu0 0.0
    %139 = vmatprep.subr.mxu0 0.0
    %140 = vmatpush1.msra.mxu0 0.0
    %141 = vmatprep.subr.mxu0 0.0
    %142 = vmatpush1.msra.mxu0 0.0
    %143 = vmatprep.subr.mxu0 0.0
    %144 = vmatpush1.msra.mxu0 0.0
    %145 = vmatprep.subr.mxu0 0.0
    %146 = vmatpush1.msra.mxu0 0.0
    %147 = vmatprep.subr.mxu0 0.0
    %148 = vmatpush1.msra.mxu0 0.0
    %149 = vmatprep.subr.mxu0 0.0
    %150 = vmatpush1.msra.mxu0 0.0
    %151 = vmatprep.subr.mxu0 0.0
    %152 = vmatpush1.msra.mxu0 0.0
    %153 = vmatprep.subr.mxu0 0.0
    %154 = vmatpush1.msra.mxu0 0.0
    %155 = vmatprep.subr.mxu0 0.0
    %156 = vmatpush1.msra.mxu0 0.0
    %157 = vmatprep.subr.mxu0 0.0
    %158 = vmatpush1.msra.mxu0 0.0
    %159 = vmatprep.subr.mxu0 0.0
    %160 = vmatpush1.msra.mxu0 0.0
    %161 = vmatprep.subr.mxu0 0.0
    %162 = vmatpush1.msra.mxu0 0.0
    %163 = vmatprep.subr.mxu0 0.0
    %164 = vmatpush1.msra.mxu0 0.0
    %165 = vmatprep.subr.mxu0 0.0
    %166 = vmatpush1.msra.mxu0 0.0
    %167 = vmatprep.subr.mxu0 0.0
    %168 = vmatpush1.msra.mxu0 0.0
    %169 = vmatprep.mubr.f32.mxu0 0.0
    %170 = vmatmul.mubr.f32.gmra.mrb[0].mxu0 %v103
    %v171 = vpop.f32.mrb[0].mxu0
    %v172 = vadd.f32 %v84, %v171
    %v173 = vpop.f32.mrb[0].mxu0
    %v174 = vadd.f32 %v88, %v173
    %175 = vdwg.mxu0
    %176 = vmatprep.subr.mxu0 %v70
    %177 = vmatpush1.msra.mxu0 %v69
    %178 = vmatprep.subr.mxu0 %v74
    %179 = vmatpush1.msra.mxu0 %v73
    %180 = vmatprep.subr.mxu0 %v78
    %181 = vmatpush1.msra.mxu0 %v77
    %182 = vmatprep.subr.mxu0 0.0
    %183 = vmatpush1.msra.mxu0 0.0
    %184 = vmatprep.subr.mxu0 0.0
    %185 = vmatpush1.msra.mxu0 0.0
    %186 = vmatprep.subr.mxu0 0.0
    %187 = vmatpush1.msra.mxu0 0.0
    %188 = vmatprep.subr.mxu0 0.0
    %189 = vmatpush1.msra.mxu0 0.0
    %190 = vmatprep.subr.mxu0 0.0
    %191 = vmatpush1.msra.mxu0 0.0
    %192 = vmatprep.subr.mxu0 0.0
    %193 = vmatpush1.msra.mxu0 0.0
    %194 = vmatprep.subr.mxu0 0.0
    %195 = vmatpush1.msra.mxu0 0.0
    %196 = vmatprep.subr.mxu0 0.0
    %197 = vmatpush1.msra.mxu0 0.0
    %198 = vmatprep.subr.mxu0 0.0
    %199 = vmatpush1.msra.mxu0 0.0
    %200 = vmatprep.subr.mxu0 0.0
    %201 = vmatpush1.msra.mxu0 0.0
    %202 = vmatprep.subr.mxu0 0.0
    %203 = vmatpush1.msra.mxu0 0.0
    %204 = vmatprep.subr.mxu0 0.0
    %205 = vmatpush1.msra.mxu0 0.0
    %206 = vmatprep.subr.mxu0 0.0
    %207 = vmatpush1.msra.mxu0 0.0
    %208 = vmatprep.subr.mxu0 0.0
    %209 = vmatpush1.msra.mxu0 0.0
    %210 = vmatprep.subr.mxu0 0.0
    %211 = vmatpush1.msra.mxu0 0.0
    %212 = vmatprep.subr.mxu0 0.0
    %213 = vmatpush1.msra.mxu0 0.0
    %214 = vmatprep.subr.mxu0 0.0
    %215 = vmatpush1.msra.mxu0 0.0
    %216 = vmatprep.subr.mxu0 0.0
    %217 = vmatpush1.msra.mxu0 0.0
    %218 = vmatprep.subr.mxu0 0.0
    %219 = vmatpush1.msra.mxu0 0.0
    %220 = vmatprep.subr.mxu0 0.0
    %221 = vmatpush1.msra.mxu0 0.0
    %222 = vmatprep.subr.mxu0 0.0
    %223 = vmatpush1.msra.mxu0 0.0
    %224 = vmatprep.subr.mxu0 0.0
    %225 = vmatpush1.msra.mxu0 0.0
    %226 = vmatprep.subr.mxu0 0.0
    %227 = vmatpush1.msra.mxu0 0.0
    %228 = vmatprep.subr.mxu0 0.0
    %229 = vmatpush1.msra.mxu0 0.0
    %230 = vmatprep.subr.mxu0 0.0
    %231 = vmatpush1.msra.mxu0 0.0
    %232 = vmatprep.subr.mxu0 0.0
    %233 = vmatpush1.msra.mxu0 0.0
    %234 = vmatprep.subr.mxu0 0.0
    %235 = vmatpush1.msra.mxu0 0.0
    %236 = vmatprep.subr.mxu0 0.0
    %237 = vmatpush1.msra.mxu0 0.0
    %238 = vmatprep.subr.mxu0 0.0
    %239 = vmatpush1.msra.mxu0 0.0
    %240 = vmatprep.mubr.f32.mxu0 0.0
    %241 = vmatmul.mubr.f32.gmra.mrb[0].mxu0 %v103
    %v242 = vpop.f32.mrb[0].mxu0
    %v243 = vadd.f32 %v92, %v242
    %v244 = vpop.f32.mrb[0].mxu0
    %v245 = vadd.f32 %v96, %v244
    %246 = vdwg.mxu0
    %v247 = vmax.f32 %v172, 0.0
    %v248 = vmax.f32 %v174, 0.0
    %v249 = vmax.f32 %v243, 0.0
    %v250 = vmax.f32 %v245, 0.0
    %v251 = vld [vmem:[#allocation7] sm:$0xff]
    %v252 = vld [vmem:[#allocation7 + $0x8] sm:$0xff]
    %v253 = vld [vmem:[#allocation7 + $0x10] sm:$0xff]
    %v254 = vld [vmem:[#allocation7 + $0x18] sm:$0xff]
    %v255 = vld [vmem:[#allocation7 + $0x20] sm:$0xff]
    %v256 = vld [vmem:[#allocation7 + $0x28] sm:$0xff]
    %v257 = vld [vmem:[#allocation7 + $0x30] sm:$0xff]
    %v258 = vld [vmem:[#allocation7 + $0x38] sm:$0xff]
    %v259 = vld [vmem:[#allocation7 + $0x40] sm:$0xff]
    %v260 = vld [vmem:[#allocation7 + $0x48] sm:$0xff]
    %v261 = vld [vmem:[#allocation7 + $0x50] sm:$0xff]
    %v262 = vld [vmem:[#allocation7 + $0x58] sm:$0xff]
    %v263 = vld [vmem:[#allocation7 + $0x60] sm:$0xff]
    %v264 = vld [vmem:[#allocation7 + $0x68] sm:$0xff]
    %v265 = vld [vmem:[#allocation7 + $0x70] sm:$0xff]
    %v266 = vld [vmem:[#allocation7 + $0x78] sm:$0xff]
    %v267 = vld [vmem:[#allocation7 + $0x80] sm:$0xff]
    %v268 = vld [vmem:[#allocation7 + $0x88] sm:$0xff]
    %v269 = vld [vmem:[#allocation7 + $0x90] sm:$0xff]
    %v270 = vld [vmem:[#allocation7 + $0x98] sm:$0xff]
    %v271 = vld [vmem:[#allocation7 + $0xa0] sm:$0xff]
    %v272 = vld [vmem:[#allocation7 + $0xa8] sm:$0xff]
    %v273 = vld [vmem:[#allocation7 + $0xb0] sm:$0xff]
    %v274 = vld [vmem:[#allocation7 + $0xb8] sm:$0xff]
    %v275 = vld [vmem:[#allocation7 + $0xc0] sm:$0xff]
    %v276 = vld [vmem:[#allocation7 + $0xc8] sm:$0xff]
    %v277 = vld [vmem:[#allocation7 + $0xd0] sm:$0xff]
    %v278 = vld [vmem:[#allocation7 + $0xd8] sm:$0xff]
    %v279 = vld [vmem:[#allocation7 + $0xe0] sm:$0xff]
    %v280 = vld [vmem:[#allocation7 + $0xe8] sm:$0xff]
    %v281 = vld [vmem:[#allocation7 + $0xf0] sm:$0xff]
    %v282 = vld [vmem:[#allocation7 + $0xf8] sm:$0xff]
    %v283 = vld [vmem:[#allocation7 + $0x100] sm:$0xff]
    %v284 = vld [vmem:[#allocation7 + $0x108] sm:$0xff]
    %v285 = vld [vmem:[#allocation7 + $0x110] sm:$0xff]
    %v286 = vld [vmem:[#allocation7 + $0x118] sm:$0xff]
    %v287 = vld [vmem:[#allocation7 + $0x120] sm:$0xff]
    %v288 = vld [vmem:[#allocation7 + $0x128] sm:$0xff]
    %v289 = vld [vmem:[#allocation7 + $0x130] sm:$0xff]
    %v290 = vld [vmem:[#allocation7 + $0x138] sm:$0xff]
    %v291 = vld [vmem:[#allocation7 + $0x140] sm:$0xff]
    %v292 = vld [vmem:[#allocation7 + $0x148] sm:$0xff]
    %v293 = vld [vmem:[#allocation7 + $0x150] sm:$0xff]
    %v294 = vld [vmem:[#allocation7 + $0x158] sm:$0xff]
    %v295 = vld [vmem:[#allocation7 + $0x160] sm:$0xff]
    %v296 = vld [vmem:[#allocation7 + $0x168] sm:$0xff]
    %v297 = vld [vmem:[#allocation7 + $0x170] sm:$0xff]
    %v298 = vld [vmem:[#allocation7 + $0x178] sm:$0xff]
    %v299 = vld [vmem:[#allocation7 + $0x180] sm:$0xff]
    %v300 = vld [vmem:[#allocation7 + $0x188] sm:$0xff]
    %v301 = vld [vmem:[#allocation7 + $0x190] sm:$0xff]
    %v302 = vld [vmem:[#allocation7 + $0x198] sm:$0xff]
    %v303 = vld [vmem:[#allocation7 + $0x1a0] sm:$0xff]
    %v304 = vld [vmem:[#allocation7 + $0x1a8] sm:$0xff]
    %v305 = vld [vmem:[#allocation7 + $0x1b0] sm:$0xff]
    %v306 = vld [vmem:[#allocation7 + $0x1b8] sm:$0xff]
    %v307 = vld [vmem:[#allocation7 + $0x1c0] sm:$0xff]
    %v308 = vld [vmem:[#allocation7 + $0x1c8] sm:$0xff]
    %v309 = vld [vmem:[#allocation7 + $0x1d0] sm:$0xff]
    %v310 = vld [vmem:[#allocation7 + $0x1d8] sm:$0xff]
    %v311 = vld [vmem:[#allocation7 + $0x1e0] sm:$0xff]
    %v312 = vld [vmem:[#allocation7 + $0x1e8] sm:$0xff]
    %v313 = vld [vmem:[#allocation7 + $0x1f0] sm:$0xff]
    %v314 = vld [vmem:[#allocation7 + $0x1f8] sm:$0xff]
    %v315 = vld [vmem:[#allocation7 + $0x200] sm:$0xff]
    %v316 = vld [vmem:[#allocation7 + $0x208] sm:$0xff]
    %v317 = vld [vmem:[#allocation7 + $0x210] sm:$0xff]
    %v318 = vld [vmem:[#allocation7 + $0x218] sm:$0xff]
    %v319 = vld [vmem:[#allocation7 + $0x220] sm:$0xff]
    %v320 = vld [vmem:[#allocation7 + $0x228] sm:$0xff]
    %v321 = vld [vmem:[#allocation7 + $0x230] sm:$0xff]
    %v322 = vld [vmem:[#allocation7 + $0x238] sm:$0xff]
    %v323 = vld [vmem:[#allocation7 + $0x240] sm:$0xff]
    %v324 = vld [vmem:[#allocation7 + $0x248] sm:$0xff]
    %v325 = vld [vmem:[#allocation7 + $0x250] sm:$0xff]
    %v326 = vld [vmem:[#allocation7 + $0x258] sm:$0xff]
    %v327 = vld [vmem:[#allocation7 + $0x260] sm:$0xff]
    %v328 = vld [vmem:[#allocation7 + $0x268] sm:$0xff]
    %v329 = vld [vmem:[#allocation7 + $0x270] sm:$0xff]
    %v330 = vld [vmem:[#allocation7 + $0x278] sm:$0xff]
    %v331 = vld [vmem:[#allocation7 + $0x280] sm:$0xff]
    %v332 = vld [vmem:[#allocation7 + $0x288] sm:$0xff]
    %v333 = vld [vmem:[#allocation7 + $0x290] sm:$0xff]
    %v334 = vld [vmem:[#allocation7 + $0x298] sm:$0xff]
    %v335 = vld [vmem:[#allocation7 + $0x2a0] sm:$0xff]
    %v336 = vld [vmem:[#allocation7 + $0x2a8] sm:$0xff]
    %v337 = vld [vmem:[#allocation7 + $0x2b0] sm:$0xff]
    %v338 = vld [vmem:[#allocation7 + $0x2b8] sm:$0xff]
    %v339 = vld [vmem:[#allocation7 + $0x2c0] sm:$0xff]
    %v340 = vld [vmem:[#allocation7 + $0x2c8] sm:$0xff]
    %v341 = vld [vmem:[#allocation7 + $0x2d0] sm:$0xff]
    %v342 = vld [vmem:[#allocation7 + $0x2d8] sm:$0xff]
    %v343 = vld [vmem:[#allocation7 + $0x2e0] sm:$0xff]
    %v344 = vld [vmem:[#allocation7 + $0x2e8] sm:$0xff]
    %v345 = vld [vmem:[#allocation7 + $0x2f0] sm:$0xff]
    %v346 = vld [vmem:[#allocation7 + $0x2f8] sm:$0xff]
    %v347 = vld [vmem:[#allocation7 + $0x300] sm:$0xff]
    %v348 = vld [vmem:[#allocation7 + $0x308] sm:$0xff]
    %v349 = vld [vmem:[#allocation7 + $0x310] sm:$0xff]
    %v350 = vld [vmem:[#allocation7 + $0x318] sm:$0xff]
    %v351 = vld [vmem:[#allocation7 + $0x320] sm:$0xff]
    %v352 = vld [vmem:[#allocation7 + $0x328] sm:$0xff]
    %v353 = vld [vmem:[#allocation7 + $0x330] sm:$0xff]
    %v354 = vld [vmem:[#allocation7 + $0x338] sm:$0xff]
    %v355 = vld [vmem:[#allocation7 + $0x340] sm:$0xff]
    %v356 = vld [vmem:[#allocation7 + $0x348] sm:$0xff]
    %v357 = vld [vmem:[#allocation7 + $0x350] sm:$0xff]
    %v358 = vld [vmem:[#allocation7 + $0x358] sm:$0xff]
    %v359 = vld [vmem:[#allocation7 + $0x360] sm:$0xff]
    %v360 = vld [vmem:[#allocation7 + $0x368] sm:$0xff]
    %v361 = vld [vmem:[#allocation7 + $0x370] sm:$0xff]
    %v362 = vld [vmem:[#allocation7 + $0x378] sm:$0xff]
    %v363 = vld [vmem:[#allocation7 + $0x380] sm:$0xff]
    %v364 = vld [vmem:[#allocation7 + $0x388] sm:$0xff]
    %v365 = vld [vmem:[#allocation7 + $0x390] sm:$0xff]
    %v366 = vld [vmem:[#allocation7 + $0x398] sm:$0xff]
    %v367 = vld [vmem:[#allocation7 + $0x3a0] sm:$0xff]
    %v368 = vld [vmem:[#allocation7 + $0x3a8] sm:$0xff]
    %v369 = vld [vmem:[#allocation7 + $0x3b0] sm:$0xff]
    %v370 = vld [vmem:[#allocation7 + $0x3b8] sm:$0xff]
    %v371 = vld [vmem:[#allocation7 + $0x3c0] sm:$0xff]
    %v372 = vld [vmem:[#allocation7 + $0x3c8] sm:$0xff]
    %v373 = vld [vmem:[#allocation7 + $0x3d0] sm:$0xff]
    %v374 = vld [vmem:[#allocation7 + $0x3d8] sm:$0xff]
    %v375 = vld [vmem:[#allocation7 + $0x3e0] sm:$0xff]
    %v376 = vld [vmem:[#allocation7 + $0x3e8] sm:$0xff]
    %v377 = vld [vmem:[#allocation7 + $0x3f0] sm:$0xff]
    %v378 = vld [vmem:[#allocation7 + $0x3f8] sm:$0xff]
    %v379 = vld [vmem:[#allocation7 + $0x400] sm:$0xff]
    %v380 = vld [vmem:[#allocation7 + $0x408] sm:$0xff]
    %v381 = vld [vmem:[#allocation7 + $0x410] sm:$0xff]
    %v382 = vld [vmem:[#allocation7 + $0x418] sm:$0xff]
    %v383 = vld [vmem:[#allocation7 + $0x420] sm:$0xff]
    %v384 = vld [vmem:[#allocation7 + $0x428] sm:$0xff]
    %v385 = vld [vmem:[#allocation7 + $0x430] sm:$0xff]
    %v386 = vld [vmem:[#allocation7 + $0x438] sm:$0xff]
    %v387 = vld [vmem:[#allocation7 + $0x440] sm:$0xff]
    %v388 = vld [vmem:[#allocation7 + $0x448] sm:$0xff]
    %v389 = vld [vmem:[#allocation7 + $0x450] sm:$0xff]
    %v390 = vld [vmem:[#allocation7 + $0x458] sm:$0xff]
    %v391 = vld [vmem:[#allocation7 + $0x460] sm:$0xff]
    %v392 = vld [vmem:[#allocation7 + $0x468] sm:$0xff]
    %v393 = vld [vmem:[#allocation7 + $0x470] sm:$0xff]
    %v394 = vld [vmem:[#allocation7 + $0x478] sm:$0xff]
    %v395 = vld [vmem:[#allocation7 + $0x480] sm:$0xff]
    %v396 = vld [vmem:[#allocation7 + $0x488] sm:$0xff]
    %v397 = vld [vmem:[#allocation7 + $0x490] sm:$0xff]
    %v398 = vld [vmem:[#allocation7 + $0x498] sm:$0xff]
    %v399 = vld [vmem:[#allocation7 + $0x4a0] sm:$0xff]
    %v400 = vld [vmem:[#allocation7 + $0x4a8] sm:$0xff]
    %v401 = vld [vmem:[#allocation7 + $0x4b0] sm:$0xff]
    %v402 = vld [vmem:[#allocation7 + $0x4b8] sm:$0xff]
    %v403 = vld [vmem:[#allocation7 + $0x4c0] sm:$0xff]
    %v404 = vld [vmem:[#allocation7 + $0x4c8] sm:$0xff]
    %v405 = vld [vmem:[#allocation7 + $0x4d0] sm:$0xff]
    %v406 = vld [vmem:[#allocation7 + $0x4d8] sm:$0xff]
    %v407 = vld [vmem:[#allocation7 + $0x4e0] sm:$0xff]
    %v408 = vld [vmem:[#allocation7 + $0x4e8] sm:$0xff]
    %v409 = vld [vmem:[#allocation7 + $0x4f0] sm:$0xff]
    %v410 = vld [vmem:[#allocation7 + $0x4f8] sm:$0xff]
    %v411 = vld [vmem:[#allocation7 + $0x500] sm:$0xff]
    %v412 = vld [vmem:[#allocation7 + $0x508] sm:$0xff]
    %v413 = vld [vmem:[#allocation7 + $0x510] sm:$0xff]
    %v414 = vld [vmem:[#allocation7 + $0x518] sm:$0xff]
    %v415 = vld [vmem:[#allocation7 + $0x520] sm:$0xff]
    %v416 = vld [vmem:[#allocation7 + $0x528] sm:$0xff]
    %v417 = vld [vmem:[#allocation7 + $0x530] sm:$0xff]
    %v418 = vld [vmem:[#allocation7 + $0x538] sm:$0xff]
    %v419 = vld [vmem:[#allocation7 + $0x540] sm:$0xff]
    %v420 = vld [vmem:[#allocation7 + $0x548] sm:$0xff]
    %v421 = vld [vmem:[#allocation7 + $0x550] sm:$0xff]
    %v422 = vld [vmem:[#allocation7 + $0x558] sm:$0xff]
    %v423 = vld [vmem:[#allocation7 + $0x560] sm:$0xff]
    %v424 = vld [vmem:[#allocation7 + $0x568] sm:$0xff]
    %v425 = vld [vmem:[#allocation7 + $0x570] sm:$0xff]
    %v426 = vld [vmem:[#allocation7 + $0x578] sm:$0xff]
    %v427 = vld [vmem:[#allocation7 + $0x580] sm:$0xff]
    %v428 = vld [vmem:[#allocation7 + $0x588] sm:$0xff]
    %v429 = vld [vmem:[#allocation7 + $0x590] sm:$0xff]
    %v430 = vld [vmem:[#allocation7 + $0x598] sm:$0xff]
    %v431 = vld [vmem:[#allocation7 + $0x5a0] sm:$0xff]
    %v432 = vld [vmem:[#allocation7 + $0x5a8] sm:$0xff]
    %v433 = vld [vmem:[#allocation7 + $0x5b0] sm:$0xff]
    %v434 = vld [vmem:[#allocation7 + $0x5b8] sm:$0xff]
    %v435 = vld [vmem:[#allocation7 + $0x5c0] sm:$0xff]
    %v436 = vld [vmem:[#allocation7 + $0x5c8] sm:$0xff]
    %v437 = vld [vmem:[#allocation7 + $0x5d0] sm:$0xff]
    %v438 = vld [vmem:[#allocation7 + $0x5d8] sm:$0xff]
    %v439 = vld [vmem:[#allocation7 + $0x5e0] sm:$0xff]
    %v440 = vld [vmem:[#allocation7 + $0x5e8] sm:$0xff]
    %v441 = vld [vmem:[#allocation7 + $0x5f0] sm:$0xff]
    %v442 = vld [vmem:[#allocation7 + $0x5f8] sm:$0xff]
    %v443 = vld [vmem:[%s4] sm:$0x7]
    %v445 = vlaneseq
    %v446 = vshrl.u32 %v445, 7
    %v447 = vsub.s32 0, %v446
    %v448 = vrot.slane %v443, %v447
    %v449 = vlaneseq
    %v450 = vshrl.u32 %v449, 7
    %v451 = vsub.s32 1, %v450
    %v452 = vrot.slane %v443, %v451
    %v453 = vlaneseq
    %v454 = vshrl.u32 %v453, 7
    %v455 = vsub.s32 2, %v454
    %v456 = vrot.slane %v443, %v455
    %460 = vmatprep.subr.mxu0 %v252
    %461 = vmatpush1.msra.mxu0 %v251
    %462 = vmatprep.subr.mxu0 %v255
    %463 = vmatpush1.msra.mxu0 %v254
    %464 = vmatprep.subr.mxu0 %v258
    %465 = vmatpush1.msra.mxu0 %v257
    %466 = vmatprep.subr.mxu0 %v261
    %467 = vmatpush1.msra.mxu0 %v260
    %468 = vmatprep.subr.mxu0 %v264
    %469 = vmatpush1.msra.mxu0 %v263
    %470 = vmatprep.subr.mxu0 %v267
    %471 = vmatpush1.msra.mxu0 %v266
    %472 = vmatprep.subr.mxu0 %v270
    %473 = vmatpush1.msra.mxu0 %v269
    %474 = vmatprep.subr.mxu0 %v273
    %475 = vmatpush1.msra.mxu0 %v272
    %476 = vmatprep.subr.mxu0 %v276
    %477 = vmatpush1.msra.mxu0 %v275
    %478 = vmatprep.subr.mxu0 %v279
    %479 = vmatpush1.msra.mxu0 %v278
    %480 = vmatprep.subr.mxu0 %v282
    %481 = vmatpush1.msra.mxu0 %v281
    %482 = vmatprep.subr.mxu0 %v285
    %483 = vmatpush1.msra.mxu0 %v284
    %484 = vmatprep.subr.mxu0 %v288
    %485 = vmatpush1.msra.mxu0 %v287
    %486 = vmatprep.subr.mxu0 %v291
    %487 = vmatpush1.msra.mxu0 %v290
    %488 = vmatprep.subr.mxu0 %v294
    %489 = vmatpush1.msra.mxu0 %v293
    %490 = vmatprep.subr.mxu0 %v297
    %491 = vmatpush1.msra.mxu0 %v296
    %492 = vmatprep.subr.mxu0 %v300
    %493 = vmatpush1.msra.mxu0 %v299
    %494 = vmatprep.subr.mxu0 %v303
    %495 = vmatpush1.msra.mxu0 %v302
    %496 = vmatprep.subr.mxu0 %v306
    %497 = vmatpush1.msra.mxu0 %v305
    %498 = vmatprep.subr.mxu0 %v309
    %499 = vmatpush1.msra.mxu0 %v308
    %500 = vmatprep.subr.mxu0 %v312
    %501 = vmatpush1.msra.mxu0 %v311
    %502 = vmatprep.subr.mxu0 %v315
    %503 = vmatpush1.msra.mxu0 %v314
    %504 = vmatprep.subr.mxu0 %v318
    %505 = vmatpush1.msra.mxu0 %v317
    %506 = vmatprep.subr.mxu0 %v321
    %507 = vmatpush1.msra.mxu0 %v320
    %508 = vmatprep.subr.mxu0 %v324
    %509 = vmatpush1.msra.mxu0 %v323
    %510 = vmatprep.subr.mxu0 %v327
    %511 = vmatpush1.msra.mxu0 %v326
    %512 = vmatprep.subr.mxu0 %v330
    %513 = vmatpush1.msra.mxu0 %v329
    %514 = vmatprep.subr.mxu0 %v333
    %515 = vmatpush1.msra.mxu0 %v332
    %516 = vmatprep.subr.mxu0 %v336
    %517 = vmatpush1.msra.mxu0 %v335
    %518 = vmatprep.subr.mxu0 %v339
    %519 = vmatpush1.msra.mxu0 %v338
    %520 = vmatprep.subr.mxu0 %v342
    %521 = vmatpush1.msra.mxu0 %v341
    %522 = vmatprep.subr.mxu0 %v345
    %523 = vmatpush1.msra.mxu0 %v344
    %524 = vmatprep.mubr.f32.mxu0 %v248
    %525 = vmatmul.mubr.f32.gmra.mrb[0].mxu0 %v247
    %v526 = vpop.f32.mrb[0].mxu0
    %v527 = vadd.f32 %v448, %v526
    %v528 = vpop.f32.mrb[0].mxu0
    %v529 = vadd.f32 %v452, %v528
    %530 = vdwg.mxu0
    %531 = vmatprep.subr.mxu0 %v348
    %532 = vmatpush1.msra.mxu0 %v347
    %533 = vmatprep.subr.mxu0 %v351
    %534 = vmatpush1.msra.mxu0 %v350
    %535 = vmatprep.subr.mxu0 %v354
    %536 = vmatpush1.msra.mxu0 %v353
    %537 = vmatprep.subr.mxu0 %v357
    %538 = vmatpush1.msra.mxu0 %v356
    %539 = vmatprep.subr.mxu0 %v360
    %540 = vmatpush1.msra.mxu0 %v359
    %541 = vmatprep.subr.mxu0 %v363
    %542 = vmatpush1.msra.mxu0 %v362
    %543 = vmatprep.subr.mxu0 %v366
    %544 = vmatpush1.msra.mxu0 %v365
    %545 = vmatprep.subr.mxu0 %v369
    %546 = vmatpush1.msra.mxu0 %v368
    %547 = vmatprep.subr.mxu0 %v372
    %548 = vmatpush1.msra.mxu0 %v371
    %549 = vmatprep.subr.mxu0 %v375
    %550 = vmatpush1.msra.mxu0 %v374
    %551 = vmatprep.subr.mxu0 %v378
    %552 = vmatpush1.msra.mxu0 %v377
    %553 = vmatprep.subr.mxu0 %v381
    %554 = vmatpush1.msra.mxu0 %v380
    %555 = vmatprep.subr.mxu0 %v384
    %556 = vmatpush1.msra.mxu0 %v383
    %557 = vmatprep.subr.mxu0 %v387
    %558 = vmatpush1.msra.mxu0 %v386
    %559 = vmatprep.subr.mxu0 %v390
    %560 = vmatpush1.msra.mxu0 %v389
    %561 = vmatprep.subr.mxu0 %v393
    %562 = vmatpush1.msra.mxu0 %v392
    %563 = vmatprep.subr.mxu0 %v396
    %564 = vmatpush1.msra.mxu0 %v395
    %565 = vmatprep.subr.mxu0 %v399
    %566 = vmatpush1.msra.mxu0 %v398
    %567 = vmatprep.subr.mxu0 %v402
    %568 = vmatpush1.msra.mxu0 %v401
    %569 = vmatprep.subr.mxu0 %v405
    %570 = vmatpush1.msra.mxu0 %v404
    %571 = vmatprep.subr.mxu0 %v408
    %572 = vmatpush1.msra.mxu0 %v407
    %573 = vmatprep.subr.mxu0 %v411
    %574 = vmatpush1.msra.mxu0 %v410
    %575 = vmatprep.subr.mxu0 %v414
    %576 = vmatpush1.msra.mxu0 %v413
    %577 = vmatprep.subr.mxu0 %v417
    %578 = vmatpush1.msra.mxu0 %v416
    %579 = vmatprep.subr.mxu0 %v420
    %580 = vmatpush1.msra.mxu0 %v419
    %581 = vmatprep.subr.mxu0 %v423
    %582 = vmatpush1.msra.mxu0 %v422
    %583 = vmatprep.subr.mxu0 %v426
    %584 = vmatpush1.msra.mxu0 %v425
    %585 = vmatprep.subr.mxu0 %v429
    %586 = vmatpush1.msra.mxu0 %v428
    %587 = vmatprep.subr.mxu0 %v432
    %588 = vmatpush1.msra.mxu0 %v431
    %589 = vmatprep.subr.mxu0 %v435
    %590 = vmatpush1.msra.mxu0 %v434
    %591 = vmatprep.subr.mxu0 %v438
    %592 = vmatpush1.msra.mxu0 %v437
    %593 = vmatprep.subr.mxu0 %v441
    %594 = vmatpush1.msra.mxu0 %v440
    %595 = vmatprep.mubr.f32.mxu0 %v250
    %596 = vmatmul.mubr.f32.gmra.mrb[0].mxu0 %v249
    %v597 = vpop.f32.mrb[0].mxu0
    %v598 = vadd.f32 %v527, %v597
    %v599 = vpop.f32.mrb[0].mxu0
    %v600 = vadd.f32 %v529, %v599
    %601 = vdwg.mxu0
    %602 = vmatprep.subr.mxu0 0.0
    %603 = vmatpush1.msra.mxu0 %v253
    %604 = vmatprep.subr.mxu0 0.0
    %605 = vmatpush1.msra.mxu0 %v256
    %606 = vmatprep.subr.mxu0 0.0
    %607 = vmatpush1.msra.mxu0 %v259
    %608 = vmatprep.subr.mxu0 0.0
    %609 = vmatpush1.msra.mxu0 %v262
    %610 = vmatprep.subr.mxu0 0.0
    %611 = vmatpush1.msra.mxu0 %v265
    %612 = vmatprep.subr.mxu0 0.0
    %613 = vmatpush1.msra.mxu0 %v268
    %614 = vmatprep.subr.mxu0 0.0
    %615 = vmatpush1.msra.mxu0 %v271
    %616 = vmatprep.subr.mxu0 0.0
    %617 = vmatpush1.msra.mxu0 %v274
    %618 = vmatprep.subr.mxu0 0.0
    %619 = vmatpush1.msra.mxu0 %v277
    %620 = vmatprep.subr.mxu0 0.0
    %621 = vmatpush1.msra.mxu0 %v280
    %622 = vmatprep.subr.mxu0 0.0
    %623 = vmatpush1.msra.mxu0 %v283
    %624 = vmatprep.subr.mxu0 0.0
    %625 = vmatpush1.msra.mxu0 %v286
    %626 = vmatprep.subr.mxu0 0.0
    %627 = vmatpush1.msra.mxu0 %v289
    %628 = vmatprep.subr.mxu0 0.0
    %629 = vmatpush1.msra.mxu0 %v292
    %630 = vmatprep.subr.mxu0 0.0
    %631 = vmatpush1.msra.mxu0 %v295
    %632 = vmatprep.subr.mxu0 0.0
    %633 = vmatpush1.msra.mxu0 %v298
    %634 = vmatprep.subr.mxu0 0.0
    %635 = vmatpush1.msra.mxu0 %v301
    %636 = vmatprep.subr.mxu0 0.0
    %637 = vmatpush1.msra.mxu0 %v304
    %638 = vmatprep.subr.mxu0 0.0
    %639 = vmatpush1.msra.mxu0 %v307
    %640 = vmatprep.subr.mxu0 0.0
    %641 = vmatpush1.msra.mxu0 %v310
    %642 = vmatprep.subr.mxu0 0.0
    %643 = vmatpush1.msra.mxu0 %v313
    %644 = vmatprep.subr.mxu0 0.0
    %645 = vmatpush1.msra.mxu0 %v316
    %646 = vmatprep.subr.mxu0 0.0
    %647 = vmatpush1.msra.mxu0 %v319
    %648 = vmatprep.subr.mxu0 0.0
    %649 = vmatpush1.msra.mxu0 %v322
    %650 = vmatprep.subr.mxu0 0.0
    %651 = vmatpush1.msra.mxu0 %v325
    %652 = vmatprep.subr.mxu0 0.0
    %653 = vmatpush1.msra.mxu0 %v328
    %654 = vmatprep.subr.mxu0 0.0
    %655 = vmatpush1.msra.mxu0 %v331
    %656 = vmatprep.subr.mxu0 0.0
    %657 = vmatpush1.msra.mxu0 %v334
    %658 = vmatprep.subr.mxu0 0.0
    %659 = vmatpush1.msra.mxu0 %v337
    %660 = vmatprep.subr.mxu0 0.0
    %661 = vmatpush1.msra.mxu0 %v340
    %662 = vmatprep.subr.mxu0 0.0
    %663 = vmatpush1.msra.mxu0 %v343
    %664 = vmatprep.subr.mxu0 0.0
    %665 = vmatpush1.msra.mxu0 %v346
    %666 = vmatprep.mubr.f32.mxu0 %v248
    %667 = vmatmul.mubr.f32.gmra.mrb[0].mxu0 %v247
    %v668 = vpop.f32.mrb[0].mxu0
    %v669 = vadd.f32 %v456, %v668
    %v670 = vpop.f32.mrb[0].mxu0
    %671 = vdwg.mxu0
    %672 = vmatprep.subr.mxu0 0.0
    %673 = vmatpush1.msra.mxu0 %v349
    %674 = vmatprep.subr.mxu0 0.0
    %675 = vmatpush1.msra.mxu0 %v352
    %676 = vmatprep.subr.mxu0 0.0
    %677 = vmatpush1.msra.mxu0 %v355
    %678 = vmatprep.subr.mxu0 0.0
    %679 = vmatpush1.msra.mxu0 %v358
    %680 = vmatprep.subr.mxu0 0.0
    %681 = vmatpush1.msra.mxu0 %v361
    %682 = vmatprep.subr.mxu0 0.0
    %683 = vmatpush1.msra.mxu0 %v364
    %684 = vmatprep.subr.mxu0 0.0
    %685 = vmatpush1.msra.mxu0 %v367
    %686 = vmatprep.subr.mxu0 0.0
    %687 = vmatpush1.msra.mxu0 %v370
    %688 = vmatprep.subr.mxu0 0.0
    %689 = vmatpush1.msra.mxu0 %v373
    %690 = vmatprep.subr.mxu0 0.0
    %691 = vmatpush1.msra.mxu0 %v376
    %692 = vmatprep.subr.mxu0 0.0
    %693 = vmatpush1.msra.mxu0 %v379
    %694 = vmatprep.subr.mxu0 0.0
    %695 = vmatpush1.msra.mxu0 %v382
    %696 = vmatprep.subr.mxu0 0.0
    %697 = vmatpush1.msra.mxu0 %v385
    %698 = vmatprep.subr.mxu0 0.0
    %699 = vmatpush1.msra.mxu0 %v388
    %700 = vmatprep.subr.mxu0 0.0
    %701 = vmatpush1.msra.mxu0 %v391
    %702 = vmatprep.subr.mxu0 0.0
    %703 = vmatpush1.msra.mxu0 %v394
    %704 = vmatprep.subr.mxu0 0.0
    %705 = vmatpush1.msra.mxu0 %v397
    %706 = vmatprep.subr.mxu0 0.0
    %707 = vmatpush1.msra.mxu0 %v400
    %708 = vmatprep.subr.mxu0 0.0
    %709 = vmatpush1.msra.mxu0 %v403
    %710 = vmatprep.subr.mxu0 0.0
    %711 = vmatpush1.msra.mxu0 %v406
    %712 = vmatprep.subr.mxu0 0.0
    %713 = vmatpush1.msra.mxu0 %v409
    %714 = vmatprep.subr.mxu0 0.0
    %715 = vmatpush1.msra.mxu0 %v412
    %716 = vmatprep.subr.mxu0 0.0
    %717 = vmatpush1.msra.mxu0 %v415
    %718 = vmatprep.subr.mxu0 0.0
    %719 = vmatpush1.msra.mxu0 %v418
    %720 = vmatprep.subr.mxu0 0.0
    %721 = vmatpush1.msra.mxu0 %v421
    %722 = vmatprep.subr.mxu0 0.0
    %723 = vmatpush1.msra.mxu0 %v424
    %724 = vmatprep.subr.mxu0 0.0
    %725 = vmatpush1.msra.mxu0 %v427
    %726 = vmatprep.subr.mxu0 0.0
    %727 = vmatpush1.msra.mxu0 %v430
    %728 = vmatprep.subr.mxu0 0.0
    %729 = vmatpush1.msra.mxu0 %v433
    %730 = vmatprep.subr.mxu0 0.0
    %731 = vmatpush1.msra.mxu0 %v436
    %732 = vmatprep.subr.mxu0 0.0
    %733 = vmatpush1.msra.mxu0 %v439
    %734 = vmatprep.subr.mxu0 0.0
    %735 = vmatpush1.msra.mxu0 %v442
    %736 = vmatprep.mubr.f32.mxu0 %v250
    %737 = vmatmul.mubr.f32.gmra.mrb[0].mxu0 %v249
    %v738 = vpop.f32.mrb[0].mxu0
    %v739 = vadd.f32 %v669, %v738
    %v740 = vpop.f32.mrb[0].mxu0
    %741 = vdwg.mxu0
    %v742 = vmax.f32 %v598, 0.0
    %v743 = vmax.f32 %v600, 0.0
    %v744 = vmax.f32 %v739, 0.0
    %v745 = vld [vmem:[%s5] sm:$0x7]
    %v747 = vlaneseq
    %v748 = vshrl.u32 %v747, 7
    %v749 = vsub.s32 0, %v748
    %v750 = vrot.slane %v745, %v749
    %v751 = vlaneseq
    %v752 = vshrl.u32 %v751, 7
    %v753 = vsub.s32 1, %v752
    %v754 = vrot.slane %v745, %v753
    %v755 = vlaneseq
    %v756 = vshrl.u32 %v755, 7
    %v757 = vsub.s32 2, %v756
    %v758 = vrot.slane %v745, %v757
    %v762 = vmul.f32 %v742, %v750
    %v763 = vmul.f32 %v743, %v754
    %v764 = vmul.f32 %v744, %v758
    %v765 = vadd.f32 %v762, %v763
    %v766 = vadd.f32 %v765, %v764
    %767 = vadd.xlane.f32.xlu0 %v766
    %v768 = vpop.xlane.xlu0 %767
    %s769 = sld [smem:[#allocation2]]
    %v770 = vstv %s769
    %v771 = vadd.f32 %v768, %v770
    %vm772 = vcmask 7168
    %773 = vst.msk [vmem:[%s7] sm:$0xff] %vm772, %v771
    // Predicated region
    $region42: #{tpu_custom_call.1} parent=1 // pred_check
      _
    $region43: #{tpu_custom_call.1} parent=1 // pred_check_branch
      %775 = sbr.rel (0) target = $region45
    $region44: #{tpu_custom_call.1} parent=1 // pred_region
      _
    $region45: #{tpu_custom_call.1} parent=1 // pred_fallthru
      _
    // Predicated region
    $region46: #{tpu_custom_call.1} parent=1 // pred_check
      _
    $region47: #{tpu_custom_call.1} parent=1 // pred_check_branch
      %777 = sbr.rel (0) target = $region49
    $region48: #{tpu_custom_call.1} parent=1 // pred_region
      _
    $region49: #{tpu_custom_call.1} parent=1 // pred_fallthru
      _
    %778 = vsyncpa [#allocation4], 1
    %779 = vsyncpa [#allocation6], 1

</llo_original>
